<compile_context>
chip_gen: v6e
topology: v6e:2x2x1
jax: 0.10.0
libtpu: 0.0.40
codegen_flags: <defaults>
</compile_context>

<pallas_src>
import functools
import math

import jax
import jax.numpy as jnp
from jax import lax
from jax.experimental import pallas as pl
from jax.experimental.pallas import tpu as pltpu


def _style_kernel(x_ref, shift_ref, s1_ref, s2_ref, b_ref, o_ref, *,
                  negative_slope, act_scale, eps, normalize):
    """out = act_scale * leaky_relu(x*s1 + shift*s2 + bias, negative_slope).

    normalize=True : s1/s2 are raw per-row scales (column vectors) -> apply
                     Norm2Scale in-kernel (rsqrt on the EUP, effectively free).
    normalize=False: s1/s2 were pre-normalized and broadcast along lanes
                     (small-HW lane-dense path).
    """
    s1 = s1_ref[...].astype(jnp.float32)
    s2 = s2_ref[...].astype(jnp.float32)
    if normalize:
        inv = lax.rsqrt(s1 * s1 + s2 * s2 + eps)     # Norm2Scale
        s1 = s1 * inv
        s2 = s2 * inv

    y = (x_ref[...].astype(jnp.float32) * s1
         + shift_ref[...].astype(jnp.float32) * s2
         + b_ref[...].astype(jnp.float32))

    # fused_leaky_relu: single select between pre-folded slopes, then one mul.
    slope = jnp.where(y >= 0.0, act_scale, act_scale * negative_slope)
    o_ref[...] = (y * slope).astype(o_ref.dtype)


def _round_up(v, m):
    return ((v + m - 1) // m) * m


def _pick_blocks(rows, lanes, itemsize, *, target_block_bytes, row_align):
    """Byte-budgeted (rows, lanes) tile.

    Lane dim: multiple of 128 (or the full lane extent).
    Row  dim: multiple of row_align (8 for f32, 16 for bf16) or the full extent.
    Target ~target_block_bytes per input block.
    """
    max_lanes = max(128, ((target_block_bytes // (row_align * itemsize)) // 128) * 128)
    tl = lanes if lanes <= max_lanes else max_lanes
    tr = (target_block_bytes // (tl * itemsize)) // row_align * row_align
    tr = max(tr, row_align)
    if tr >= rows:
        tr = rows                      # full-dim block is always legal
    return tr, tl


def style_layer_norm_scale_shift(x, shift, scale1, scale2, bias, *,
                                 negative_slope=0.2,
                                 act_scale=math.sqrt(2.0),
                                 eps=1e-8,
                                 target_block_bytes=2 * 1024 * 1024):
    """Forward of StyleLayer_norm_scale_shift.

    x, shift : (N, C, H, W)    scale1, scale2 : (N, C)    bias : (C,)
    """
    N, C, H, W = x.shape
    assert shift.shape == x.shape
    assert scale1.shape == (N, C) and scale2.shape == (N, C)
    assert bias.shape == (C,)
    HW = H * W

    itemsize = jnp.dtype(x.dtype).itemsize
    row_align = 8 if itemsize >= 4 else max(8, 32 // itemsize)   # 8 f32, 16 bf16

    if HW >= 128:
        # Main path: rows = N*C, lanes = H*W (lane-dense, per-row scale columns).
        rows, lanes = N * C, HW
        x2 = x.reshape(rows, lanes)
        sh2 = shift.reshape(rows, lanes)
        s1 = scale1.reshape(rows, 1).astype(jnp.float32)
        s2 = scale2.reshape(rows, 1).astype(jnp.float32)
        b = jnp.broadcast_to(bias.astype(jnp.float32)[None, :], (N, C)).reshape(rows, 1)

        tr, tl = _pick_blocks(rows, lanes, itemsize,
                              target_block_bytes=target_block_bytes,
                              row_align=row_align)
        grid = (pl.cdiv(rows, tr), pl.cdiv(lanes, tl))
        in_specs = [
            pl.BlockSpec((tr, tl), lambda i, j: (i, j)),    # x
            pl.BlockSpec((tr, tl), lambda i, j: (i, j)),    # shift
            pl.BlockSpec((tr, 1), lambda i, j: (i, 0)),     # scale1 (per-row)
            pl.BlockSpec((tr, 1), lambda i, j: (i, 0)),     # scale2 (per-row)
            pl.BlockSpec((tr, 1), lambda i, j: (i, 0)),     # bias   (per-row)
        ]
        out_spec = pl.BlockSpec((tr, tl), lambda i, j: (i, j))
        operands = (x2, sh2, s1, s2, b)
        normalize = True
        scale_block_bytes = 2 * 3 * tr * 4                  # tiny columns
    else:
        # Small spatial sizes: fold C into the lane axis so stores stay
        # lane-dense (unmasked vst); Norm2Scale is precomputed (N*C elements)
        # and broadcast along lanes.
        rows, lanes = N, C * HW
        x2 = x.reshape(rows, lanes)
        sh2 = shift.reshape(rows, lanes)
        sc1 = scale1.astype(jnp.float32)
        sc2 = scale2.astype(jnp.float32)
        inv = lax.rsqrt(sc1 * sc1 + sc2 * sc2 + eps)
        s1 = jnp.broadcast_to((sc1 * inv)[:, :, None], (N, C, HW)).reshape(rows, lanes)
        s2 = jnp.broadcast_to((sc2 * inv)[:, :, None], (N, C, HW)).reshape(rows, lanes)
        b = jnp.broadcast_to(bias.astype(jnp.float32)[None, :, None],
                             (1, C, HW)).reshape(1, lanes)

        tr, tl = _pick_blocks(rows, lanes, itemsize,
                              target_block_bytes=target_block_bytes,
                              row_align=row_align)
        grid = (pl.cdiv(rows, tr), pl.cdiv(lanes, tl))
        in_specs = [
            pl.BlockSpec((tr, tl), lambda i, j: (i, j)),    # x
            pl.BlockSpec((tr, tl), lambda i, j: (i, j)),    # shift
            pl.BlockSpec((tr, tl), lambda i, j: (i, j)),    # s1 (broadcast)
            pl.BlockSpec((tr, tl), lambda i, j: (i, j)),    # s2 (broadcast)
            pl.BlockSpec((1, tl), lambda i, j: (0, j)),     # bias row
        ]
        out_spec = pl.BlockSpec((tr, tl), lambda i, j: (i, j))
        operands = (x2, sh2, s1, s2, b)
        normalize = False
        scale_block_bytes = 2 * (2 * tr * tl + tl) * 4      # f32 broadcast scales

    # Explicit VMEM budget: double-buffered x/shift/out blocks + scale operands,
    # with 2x margin, capped well below v7x's 64 MiB physical VMEM.
    block_elems = tr * tl
    big_bytes = 2 * 3 * block_elems * itemsize + scale_block_bytes
    vmem_limit = int(min(max(big_bytes * 2, 32 << 20), 48 << 20))

    kernel = functools.partial(_style_kernel,
                               negative_slope=float(negative_slope),
                               act_scale=float(act_scale),
                               eps=float(eps),
                               normalize=normalize)

    out = pl.pallas_call(
        kernel,
        out_shape=jax.ShapeDtypeStruct((rows, lanes), x.dtype),
        grid_spec=pltpu.PrefetchScalarGridSpec(
            num_scalar_prefetch=0,
            grid=grid,
            in_specs=in_specs,
            out_specs=out_spec,
        ),
        compiler_params=pltpu.CompilerParams(
            dimension_semantics=("parallel", "parallel"),
            vmem_limit_bytes=vmem_limit),
    )(*operands)

    return out.reshape(N, C, H, W)


def _reference(x, shift, scale1, scale2, bias,
               negative_slope=0.2, act_scale=math.sqrt(2.0), eps=1e-8):
    inv = 1.0 / jnp.sqrt(scale1 ** 2 + scale2 ** 2 + eps)
    s1n = (scale1 * inv)[:, :, None, None]
    s2n = (scale2 * inv)[:, :, None, None]
    y = x * s1n + shift * s2n + bias[None, :, None, None]
    return act_scale * jnp.where(y >= 0, y, negative_slope * y)


if __name__ == "__main__":
    key = jax.random.PRNGKey(0)

    # Main path: batch=2, channels=4, spatial=16x16 (HW = 256 >= 128).
    N, C, H, W = 2, 4, 16, 16
    kx, ksh, ks1, ks2, kb, key = jax.random.split(key, 6)
    x = jax.random.normal(kx, (N, C, H, W), dtype=jnp.float32)
    shift = jax.random.normal(ksh, (N, C, H, W), dtype=jnp.float32)
    scale1 = jax.random.normal(ks1, (N, C), dtype=jnp.float32)
    scale2 = jax.random.normal(ks2, (N, C), dtype=jnp.float32)
    bias = 0.1 * jax.random.normal(kb, (C,), dtype=jnp.float32)

    # TODO(synk): the module also constructs ModulatedLayer, a scalar `weight`
    # parameter and accepts `noise`, but none are used in forward, so omitted.

    out = jax.block_until_ready(
        style_layer_norm_scale_shift(x, shift, scale1, scale2, bias))
    ref = _reference(x, shift, scale1, scale2, bias)
    assert out.shape == ref.shape == (N, C, H, W)
    assert jnp.allclose(out, ref, rtol=1e-5, atol=1e-5), \
        f"main path max abs err = {jnp.max(jnp.abs(out - ref))}"

    # Small-spatial lane-dense path: batch=2, channels=8, spatial=4x4 (HW < 128).
    N2, C2, H2, W2 = 2, 8, 4, 4
    kx, ksh, ks1, ks2, kb, key = jax.random.split(key, 6)
    x2 = jax.random.normal(kx, (N2, C2, H2, W2), dtype=jnp.float32)
    shift2 = jax.random.normal(ksh, (N2, C2, H2, W2), dtype=jnp.float32)
    scale1b = jax.random.normal(ks1, (N2, C2), dtype=jnp.float32)
    scale2b = jax.random.normal(ks2, (N2, C2), dtype=jnp.float32)
    bias2 = 0.1 * jax.random.normal(kb, (C2,), dtype=jnp.float32)

    out2 = jax.block_until_ready(
        style_layer_norm_scale_shift(x2, shift2, scale1b, scale2b, bias2))
    ref2 = _reference(x2, shift2, scale1b, scale2b, bias2)
    assert jnp.allclose(out2, ref2, rtol=1e-5, atol=1e-5), \
        f"small-HW path max abs err = {jnp.max(jnp.abs(out2 - ref2))}"

    print("KERNEL_OK")
</pallas_src>

<mosaic_0001>
module attributes {stable_mosaic.version = 11 : i64} {
  func.func @_style_kernel(%arg0: i32, %arg1: i32, %arg2: memref<8x256xf32, #tpu.memory_space<vmem>>, %arg3: memref<8x256xf32, #tpu.memory_space<vmem>>, %arg4: memref<8x1xf32, #tpu.memory_space<vmem>>, %arg5: memref<8x1xf32, #tpu.memory_space<vmem>>, %arg6: memref<8x1xf32, #tpu.memory_space<vmem>>, %arg7: memref<8x256xf32, #tpu.memory_space<vmem>>) attributes {dimension_semantics = [#tpu.dimension_semantics<parallel>, #tpu.dimension_semantics<parallel>], iteration_bounds = array<i64: 1, 1>, scalar_prefetch = 0 : i64, scratch_operands = 0 : i64, tpu.core_type = #tpu.core_type<tc>, window_params = [{transform_indices = @transform_0, window_bounds = array<i64: 8, 256>}, {transform_indices = @transform_1, window_bounds = array<i64: 8, 256>}, {transform_indices = @transform_2, window_bounds = array<i64: 8, 1>}, {transform_indices = @transform_3, window_bounds = array<i64: 8, 1>}, {transform_indices = @transform_4, window_bounds = array<i64: 8, 1>}, {transform_indices = @transform_5, window_bounds = array<i64: 8, 256>}]} {
    %c0 = arith.constant 0 : index
    %c0_0 = arith.constant 0 : index
    %0 = vector.load %arg4[%c0, %c0_0] : memref<8x1xf32, #tpu.memory_space<vmem>>, vector<8x1xf32>
    %c0_1 = arith.constant 0 : index
    %c0_2 = arith.constant 0 : index
    %1 = vector.load %arg5[%c0_1, %c0_2] : memref<8x1xf32, #tpu.memory_space<vmem>>, vector<8x1xf32>
    %2 = arith.mulf %0, %0 : vector<8x1xf32>
    %3 = arith.mulf %1, %1 : vector<8x1xf32>
    %4 = arith.addf %2, %3 : vector<8x1xf32>
    %cst = arith.constant 9.99999993E-9 : f32
    %5 = vector.broadcast %cst : f32 to vector<8x1xf32>
    %6 = arith.addf %4, %5 : vector<8x1xf32>
    %7 = math.rsqrt %6 : vector<8x1xf32>
    %8 = arith.mulf %0, %7 : vector<8x1xf32>
    %9 = arith.mulf %1, %7 : vector<8x1xf32>
    %c0_3 = arith.constant 0 : index
    %c0_4 = arith.constant 0 : index
    %10 = vector.load %arg2[%c0_3, %c0_4] : memref<8x256xf32, #tpu.memory_space<vmem>>, vector<8x256xf32>
    %11 = vector.broadcast %8 : vector<8x1xf32> to vector<8x256xf32>
    %12 = arith.mulf %10, %11 : vector<8x256xf32>
    %c0_5 = arith.constant 0 : index
    %c0_6 = arith.constant 0 : index
    %13 = vector.load %arg3[%c0_5, %c0_6] : memref<8x256xf32, #tpu.memory_space<vmem>>, vector<8x256xf32>
    %14 = vector.broadcast %9 : vector<8x1xf32> to vector<8x256xf32>
    %15 = arith.mulf %13, %14 : vector<8x256xf32>
    %16 = arith.addf %12, %15 : vector<8x256xf32>
    %c0_7 = arith.constant 0 : index
    %c0_8 = arith.constant 0 : index
    %17 = vector.load %arg6[%c0_7, %c0_8] : memref<8x1xf32, #tpu.memory_space<vmem>>, vector<8x1xf32>
    %18 = vector.broadcast %17 : vector<8x1xf32> to vector<8x256xf32>
    %19 = arith.addf %16, %18 : vector<8x256xf32>
    %cst_9 = arith.constant 0.000000e+00 : f32
    %20 = vector.broadcast %cst_9 : f32 to vector<8x256xf32>
    %21 = arith.cmpf oge, %19, %20 : vector<8x256xf32>
    %cst_10 = arith.constant 1.41421354 : f32
    %cst_11 = arith.constant 0.282842726 : f32
    %22 = vector.broadcast %cst_10 : f32 to vector<8x256xf32>
    %23 = vector.broadcast %cst_11 : f32 to vector<8x256xf32>
    %24 = arith.select %21, %22, %23 : vector<8x256xi1>, vector<8x256xf32>
    %25 = arith.mulf %19, %24 : vector<8x256xf32>
    %c0_12 = arith.constant 0 : index
    %c0_13 = arith.constant 0 : index
    %26 = vector.load %arg7[%c0_12, %c0_13] : memref<8x256xf32, #tpu.memory_space<vmem>>, vector<8x256xf32>
    tpu.vector_store %arg7[%c0_12, %c0_13], %25 {strides = array<i32>} : memref<8x256xf32, #tpu.memory_space<vmem>>, vector<8x256xf32>,
    return
  }
  func.func @transform_0(%arg0: i32, %arg1: i32) -> (i32, i32) {
    %c0_i32 = arith.constant 0 : i32
    return %arg0, %arg1 : i32, i32
  }
  func.func @transform_1(%arg0: i32, %arg1: i32) -> (i32, i32) {
    %c0_i32 = arith.constant 0 : i32
    return %arg0, %arg1 : i32, i32
  }
  func.func @transform_2(%arg0: i32, %arg1: i32) -> (i32, i32) {
    %c0_i32 = arith.constant 0 : i32
    %c0_i32_0 = arith.constant 0 : i32
    return %arg0, %c0_i32 : i32, i32
  }
  func.func @transform_3(%arg0: i32, %arg1: i32) -> (i32, i32) {
    %c0_i32 = arith.constant 0 : i32
    %c0_i32_0 = arith.constant 0 : i32
    return %arg0, %c0_i32 : i32, i32
  }
  func.func @transform_4(%arg0: i32, %arg1: i32) -> (i32, i32) {
    %c0_i32 = arith.constant 0 : i32
    %c0_i32_0 = arith.constant 0 : i32
    return %arg0, %c0_i32 : i32, i32
  }
  func.func @transform_5(%arg0: i32, %arg1: i32) -> (i32, i32) {
    %c0_i32 = arith.constant 0 : i32
    return %arg0, %arg1 : i32, i32
  }
}

</mosaic_0001>

<llo_original>
// kernel: tpu_custom_call.1
$region0: #{tpu_custom_call.1}
  #allocation0 [shape = 'u32[]', space=smem, size = 0x4, offset = 0x4, fixed_abs, tag = 'smem constant byte address 0x4 - core index']
  #allocation1 [shape = 'u32[144,128]{1,0:T(1,128)}', space=vmem, size = 0x12000, scoped, tag = 'internal scratch']
  %s0 = inlined_call_operand.vmem [shape: f32[8,256], index: 0, kind: input, shape index: {}]
  %s1 = inlined_call_operand.hbm [shape: f32[8,256], index: 1, kind: input, shape index: {}]
  %s2 = inlined_call_operand.vmem [shape: f32[8,1], index: 2, kind: input, shape index: {}]
  %s3 = inlined_call_operand.vmem [shape: f32[8,1], index: 3, kind: input, shape index: {}]
  %s4 = inlined_call_operand.vmem [shape: f32[8,1], index: 4, kind: input, shape index: {}]
  %s5 = inlined_call_operand.hbm [shape: f32[8,256], index: 5, kind: output, shape index: {}]
  %s6 = sld [smem:[#allocation0]]
  $region34: #{tpu_custom_call.1} parent=0
    _
  %s8 = ssub.s32 1, %s6
  %s9 = scalar_select 0, %s8, %s6
  $region1: #{tpu_custom_call.1} parent=0
    #allocation2 [shape = 'u8[8192]{0}', space=vmem, size = 0x2000, scoped, tag = 'input window, operand 1, single buffered']
    #allocation3 [shape = 's32[1]{0}', space=sflag, size = 0x4, scoped, tag = 'scoped memory for tpu_custom_call.1']
    #allocation4 [shape = 's32[1]{0}', space=sflag, size = 0x4, scoped, tag = 'scoped memory for tpu_custom_call.1']
    #allocation5 [shape = 'u8[8192]{0}', space=vmem, size = 0x2000, scoped, tag = 'output window, operand 0, single buffered']
    %10 = vsyncpa [#allocation3], 0
    %11 = vsyncpa [#allocation4], 0
    // Predicated region
    $region2: #{tpu_custom_call.1} parent=1 // pred_check
      _
    $region3: #{tpu_custom_call.1} parent=1 // pred_check_branch
      %13 = sbr.rel (0) target = $region5
    $region4: #{tpu_custom_call.1} parent=1 // pred_region
      _
    $region5: #{tpu_custom_call.1} parent=1 // pred_fallthru
      _
    // Predicated region
    $region6: #{tpu_custom_call.1} parent=1 // pred_check
      _
    $region7: #{tpu_custom_call.1} parent=1 // pred_check_branch
      %15 = sbr.rel (0) target = $region9
    $region8: #{tpu_custom_call.1} parent=1 // pred_region
      %s17 = ssub.s32 256, 256
      %18 = vsyncadd [#allocation3], %s17
      %s20 = sshll.u32 [#allocation2], 4
      %s21 = int_to_ptr.vmem [resolvable:$true] %s20
      %23 = dma.hbm_to_vmem [thread:$0]  %s1, 256, %s21, [#allocation3]
    $region9: #{tpu_custom_call.1} parent=1 // pred_fallthru
      _
    // Predicated region
    $region10: #{tpu_custom_call.1} parent=1 // pred_check
      _
    $region11: #{tpu_custom_call.1} parent=1 // pred_check_branch
      %25 = sbr.rel (0) target = $region13
    $region12: #{tpu_custom_call.1} parent=1 // pred_region
      _
    $region13: #{tpu_custom_call.1} parent=1 // pred_fallthru
      _
    // Predicated region
    $region14: #{tpu_custom_call.1} parent=1 // pred_check
      _
    $region15: #{tpu_custom_call.1} parent=1 // pred_check_branch
      %27 = sbr.rel (0) target = $region17
    $region16: #{tpu_custom_call.1} parent=1 // pred_region
      _
    $region17: #{tpu_custom_call.1} parent=1 // pred_fallthru
      _
    // Predicated region
    $region18: #{tpu_custom_call.1} parent=1 // pred_check
      _
    $region19: #{tpu_custom_call.1} parent=1 // pred_check_branch
      %29 = sbr.rel (0) target = $region21
    $region20: #{tpu_custom_call.1} parent=1 // pred_region
      _
    $region21: #{tpu_custom_call.1} parent=1 // pred_fallthru
      _
    // Predicated region
    $region22: #{tpu_custom_call.1} parent=1 // pred_check
      _
    $region23: #{tpu_custom_call.1} parent=1 // pred_check_branch
      %31 = sbr.rel (0) target = $region25
    $region24: #{tpu_custom_call.1} parent=1 // pred_region
      %32 = dma.done [#allocation3], 256
    $region25: #{tpu_custom_call.1} parent=1 // pred_fallthru
      _
    %v33 = vld [vmem:[%s2] sm:$0xff]
    %v34 = vld [vmem:[%s3] sm:$0xff]
    %v35 = vmul.f32 %v33, %v33
    %v36 = vmul.f32 %v34, %v34
    %v37 = vadd.f32 %v35, %v36
    %v38 = vadd.f32 %v37, 1e-08
    %v39 = vrsqrt.pop %v38
    %v40 = vmul.f32 %v33, %v39
    %v41 = vmul.f32 %v34, %v39
    %v42 = vld [vmem:[%s0] sm:$0xff]
    %v43 = vld [vmem:[%s0 + $0x8] sm:$0xff]
    %45 = vset.pattern.permute.xlu0 0
    %46 = vperm.xlu0 %45, %v40
    %v47 = vpop.permute.xlu0 %46
    %v49 = vmul.f32 %v42, %v47
    %v50 = vmul.f32 %v43, %v47
    %v51 = vld [vmem:[#allocation2] sm:$0xff]
    %v52 = vld [vmem:[#allocation2 + $0x8] sm:$0xff]
    %54 = vset.pattern.permute.xlu0 0
    %55 = vperm.xlu0 %54, %v41
    %v56 = vpop.permute.xlu0 %55
    %v58 = vmul.f32 %v51, %v56
    %v59 = vmul.f32 %v52, %v56
    %v60 = vadd.f32 %v49, %v58
    %v61 = vadd.f32 %v50, %v59
    %v62 = vld [vmem:[%s4] sm:$0xff]
    %64 = vset.pattern.permute.xlu0 0
    %65 = vperm.xlu0 %64, %v62
    %v66 = vpop.permute.xlu0 %65
    %v68 = vadd.f32 %v60, %v66
    %v69 = vadd.f32 %v61, %v66
    %vm70 = vcmp.ge.f32.partialorder %v68, 0.0
    %vm71 = vcmp.ge.f32.partialorder %v69, 0.0
    %v72 = vsel %vm70, 1.4142135, 0.28284273
    %v73 = vsel %vm71, 1.4142135, 0.28284273
    %v74 = vmul.f32 %v68, %v72
    %v75 = vmul.f32 %v69, %v73
    %76 = vst [vmem:[#allocation5] sm:$0xff] %v74
    %77 = vst [vmem:[#allocation5 + $0x8] sm:$0xff] %v75
    // Predicated region
    $region26: #{tpu_custom_call.1} parent=1 // pred_check
      _
    $region27: #{tpu_custom_call.1} parent=1 // pred_check_branch
      %79 = sbr.rel (0) target = $region29
    $region28: #{tpu_custom_call.1} parent=1 // pred_region
      %s81 = ssub.s32 256, 256
      %82 = vsyncadd [#allocation4], %s81
      %s84 = sshll.u32 [#allocation5], 4
      %s85 = int_to_ptr.vmem [resolvable:$true] %s84
      %87 = dma.vmem_to_hbm [thread:$0]  %s85, 256, %s5, [#allocation4]
    $region29: #{tpu_custom_call.1} parent=1 // pred_fallthru
      _
    // Predicated region
    $region30: #{tpu_custom_call.1} parent=1 // pred_check
      _
    $region31: #{tpu_custom_call.1} parent=1 // pred_check_branch
      %89 = sbr.rel (0) target = $region33
    $region32: #{tpu_custom_call.1} parent=1 // pred_region
      %90 = dma.done [#allocation4], 256
    $region33: #{tpu_custom_call.1} parent=1 // pred_fallthru
      _
    %91 = vsyncpa [#allocation3], 1
    %92 = vsyncpa [#allocation4], 1

</llo_original>
